<compile_context>
chip_gen: v7x
topology: tpu7x:2x2x1
jax: 0.10.0
libtpu: 0.0.40
codegen_flags: <defaults>
</compile_context>

<pallas_src>
import functools
import math

import numpy as np
import jax
import jax.numpy as jnp
from jax import lax
from jax.experimental import pallas as pl
from jax.experimental.pallas import tpu as pltpu


_MIB = 1024 * 1024


def _tpu_info():
    """(per-kernel live-block byte budget, vmem_limit_bytes, #TensorCores) by generation."""
    try:
        kind = jax.devices()[0].device_kind.lower()
    except Exception:  # pragma: no cover - defensive
        kind = ""
    if "v7" in kind:      # v7x: 64 MiB physical VMEM / TC, 2 TCs per chip
        return 28 * _MIB, 48 * _MIB, 2
    if "v6" in kind:      # v6e: 128 MiB physical VMEM
        return 64 * _MIB, 100 * _MIB, 1
    if "v5" in kind:      # v5e / v5p: keep an explicit limit above the 16 MiB scoped default
        return 32 * _MIB, 64 * _MIB, 1
    return 20 * _MIB, 40 * _MIB, 1  # unknown -> conservative


_BLOCK_BUDGET, _VMEM_LIMIT, _NUM_TC = _tpu_info()


def _compiler_params(*semantics):
    return pltpu.CompilerParams(
        dimension_semantics=tuple(semantics),
        vmem_limit_bytes=_VMEM_LIMIT,
    )


def _pick_rows(height, width, n_streams, n_batch=1):
    """Largest row tile that is a multiple of 8, divides `height`, and keeps
    `n_streams` double-buffered (1, rows, width) f32 blocks under the VMEM budget.
    On multi-TC chips prefer a tile leaving >= 8 total grid steps (megacore balance
    + room to hide the ~0.35us/step pipeline overhead)."""
    bytes_per_row = 2 * n_streams * width * 4            # x2 for double buffering
    max_rows = max(8, _BLOCK_BUDGET // bytes_per_row)
    cands = [r for r in range(8, min(height, 512) + 1, 8)
             if height % r == 0 and r <= max_rows]
    if not cands:
        return height                                    # untiled fallback
    if _NUM_TC > 1:
        busy = [r for r in cands if n_batch * (height // r) >= 8]
        if busy:
            return max(busy)
    return max(cands)


def _row_spec(rows, width, prefetch=False):
    if prefetch:   # index_map also receives the scalar-prefetch ref (ignored)
        return pl.BlockSpec((1, rows, width), lambda n, r, s: (n, r, 0))
    return pl.BlockSpec((1, rows, width), lambda n, r: (n, r, 0))


def _partial_spec(prefetch=False):
    """Per-batch (1,1) scalar accumulator block living in SMEM."""
    if prefetch:
        return pl.BlockSpec((1, 1), lambda n, r, s: (n, 0),
                            memory_space=pltpu.MemorySpace.SMEM)
    return pl.BlockSpec((1, 1), lambda n, r: (n, 0),
                        memory_space=pltpu.MemorySpace.SMEM)


# ----------------------------------------------------------------------------
# Mosaic-safe inverse trig (built only from mul/add/div/sqrt/select/compare)
# ----------------------------------------------------------------------------

def _atan2(y, x):
    """float32 atan2, cephes-style, ~1e-7 max error; avoids relying on a
    lax.atan2/acos Mosaic lowering rule."""
    ax = jnp.abs(x)
    ay = jnp.abs(y)
    mx = jnp.maximum(ax, ay)
    mn = jnp.minimum(ax, ay)
    t = mn / jnp.maximum(mx, jnp.float32(1e-30))          # in [0, 1]
    # atan(t) on [0, 1] with one range reduction around tan(pi/8)
    mid = t > jnp.float32(0.4142135623730950)
    xr = jnp.where(mid, (t - 1.0) / (t + 1.0), t)
    off = jnp.where(mid, jnp.float32(0.25 * math.pi), jnp.float32(0.0))
    z = xr * xr
    p = ((jnp.float32(8.05374449538e-2) * z
          - jnp.float32(1.38776856032e-1)) * z
         + jnp.float32(1.99777106478e-1)) * z - jnp.float32(3.33329491539e-1)
    a = off + (xr + xr * z * p)
    a = jnp.where(ay > ax, jnp.float32(0.5 * math.pi) - a, a)
    a = jnp.where(x < 0.0, jnp.float32(math.pi) - a, a)
    return jnp.where(y < 0.0, -a, a)


def _acos01(a):
    """acos for a in [0, 1): acos(a) = atan2(sqrt((1-a)(1+a)), a)."""
    s = jnp.sqrt(jnp.maximum((1.0 - a) * (1.0 + a), jnp.float32(0.0)))
    return _atan2(s, a)


# ----------------------------------------------------------------------------
# Pallas kernels
# ----------------------------------------------------------------------------

def _polar_to_rect_kernel(amp_ref, ang_ref, real_ref, imag_ref):
    amp = amp_ref[...]
    ang = ang_ref[...]
    real_ref[...] = amp * jnp.cos(ang)
    imag_ref[...] = amp * jnp.sin(ang)


def polar_to_rect(amp, ang):
    B, C, H, W = amp.shape
    N = B * C
    a3 = amp.reshape(N, H, W)
    p3 = ang.reshape(N, H, W)
    rows = _pick_rows(H, W, n_streams=4, n_batch=N)       # 2 in + 2 out streams
    spec = _row_spec(rows, W)
    out_sd = jax.ShapeDtypeStruct((N, H, W), jnp.float32)
    real3, imag3 = pl.pallas_call(
        _polar_to_rect_kernel,
        out_shape=(out_sd, out_sd),
        grid=(N, H // rows),
        in_specs=[spec, spec],
        out_specs=(spec, spec),
        compiler_params=_compiler_params("parallel", "parallel"),
    )(a3, p3)
    return real3.reshape(B, C, H, W), imag3.reshape(B, C, H, W)


def _abs_sq_max_kernel(fr_ref, fi_ref, pmax_ref):
    # per-N running max of |field|^2 (no per-element sqrt; single sqrt done in XLA)
    @pl.when(pl.program_id(1) == 0)
    def _():
        pmax_ref[0, 0] = jnp.float32(0.0)                 # |field|^2 >= 0: safe identity
    fr = fr_ref[...]
    fi = fi_ref[...]
    pmax_ref[0, 0] = jnp.maximum(pmax_ref[0, 0], jnp.max(fr * fr + fi * fi))


def _phase_emit_sum_kernel(amax_ref, fr_ref, fi_ref, ph_ref, psum_ref):
    # single transcendental pass: emit checkerboarded phases + per-N partial sum
    @pl.when(pl.program_id(1) == 0)
    def _():
        psum_ref[0, 0] = jnp.float32(0.0)
    inv_amax = 1.0 / amax_ref[0]                          # scalar, once per tile
    fr = fr_ref[...]
    fi = fi_ref[...]
    amp = jnp.sqrt(fr * fr + fi * fi) * inv_amax
    # reference clamps to [-0.99999, 0.99999]; amp >= 0 so the lower bound is dead code
    amp = jnp.minimum(amp, jnp.float32(0.99999))
    ang = _atan2(fi, fr)
    acos_amp = _acos01(amp)
    # checkerboard: (h + w) odd -> +acos (phases_b), even -> -acos (phases_a).
    # Row-tile offsets are multiples of 8 (or 0), so local parity == global parity.
    row = lax.broadcasted_iota(jnp.int32, fr.shape, dimension=1)
    col = lax.broadcasted_iota(jnp.int32, fr.shape, dimension=2)
    sign = 2.0 * ((row ^ col) & 1).astype(jnp.float32) - 1.0
    phases = ang + sign * acos_amp
    ph_ref[...] = phases
    psum_ref[0, 0] += jnp.sum(phases)


def _phase_wrap_kernel(mean_ref, ph_ref, out_ref, *, max_phase):
    half = jnp.float32(0.5 * max_phase)
    inv_mp = jnp.float32(1.0 / max_phase)
    x = (ph_ref[...] - mean_ref[0]) + half
    # x % max_phase via floor + constant reciprocal (matches torch's float %)
    out_ref[...] = x - jnp.float32(max_phase) * jnp.floor(x * inv_mp) - half


def double_phase(field_real, field_imag, three_pi=False, mean_adjust=True):
    B, C, H, W = field_real.shape
    N = B * C
    fr3 = field_real.reshape(N, H, W)
    fi3 = field_imag.reshape(N, H, W)
    max_phase = 3.0 * math.pi if three_pi else 2.0 * math.pi
    partial_sd = jax.ShapeDtypeStruct((N, 1), jnp.float32)

    # --- pass 1: per-N partial max of |field|^2 (megacore-splittable reduction) ---
    rows_r = _pick_rows(H, W, n_streams=2, n_batch=N)
    spec_r = _row_spec(rows_r, W)
    pmax = pl.pallas_call(
        _abs_sq_max_kernel,
        out_shape=partial_sd,
        grid=(N, H // rows_r),
        in_specs=[spec_r, spec_r],
        out_specs=_partial_spec(),
        compiler_params=_compiler_params("parallel", "arbitrary"),
    )(fr3, fi3)
    # single scalar sqrt of the global max; clamp guards an all-zero field
    # (the reference would divide by zero / NaN there - intentional benign deviation).
    amax = jnp.maximum(jnp.sqrt(jnp.max(pmax)), jnp.float32(1e-30)).reshape(1)

    # --- pass 2: emit phases + per-N partial phase sums (transcendentals done ONCE) ---
    rows_p = _pick_rows(H, W, n_streams=3, n_batch=N)     # fr, fi in + phases out
    spec_p = _row_spec(rows_p, W, prefetch=True)
    phases3, psum = pl.pallas_call(
        _phase_emit_sum_kernel,
        out_shape=(jax.ShapeDtypeStruct((N, H, W), jnp.float32), partial_sd),
        grid_spec=pltpu.PrefetchScalarGridSpec(
            num_scalar_prefetch=1,
            grid=(N, H // rows_p),
            in_specs=[spec_p, spec_p],
            out_specs=(spec_p, _partial_spec(prefetch=True)),
        ),
        compiler_params=_compiler_params("parallel", "arbitrary"),
    )(amax, fr3, fi3)

    if mean_adjust:
        mean = (jnp.sum(psum) * jnp.float32(1.0 / (N * H * W))).reshape(1)
    else:
        mean = jnp.zeros((1,), jnp.float32)

    # --- pass 3: wrap(phases - mean)  (pure VPU, single input stream, fully parallel) ---
    rows_f = _pick_rows(H, W, n_streams=2, n_batch=N)
    spec_f = _row_spec(rows_f, W, prefetch=True)
    out3 = pl.pallas_call(
        functools.partial(_phase_wrap_kernel, max_phase=max_phase),
        out_shape=jax.ShapeDtypeStruct((N, H, W), jnp.float32),
        grid_spec=pltpu.PrefetchScalarGridSpec(
            num_scalar_prefetch=1,
            grid=(N, H // rows_f),
            in_specs=[spec_f],
            out_specs=spec_f,
        ),
        compiler_params=_compiler_params("parallel", "parallel"),
    )(mean, phases3)
    return out3.reshape(B, C, H, W)


# ----------------------------------------------------------------------------
# ASM propagation (glue: analytic kernel precompute + FFTs / complex math in XLA)
# ----------------------------------------------------------------------------

def asm_precompute_H(shape, feature_size, wavelength, z):
    """Band-limited ASM transfer function at the 2x (linear-conv) padded resolution.
    Returns complex64 of shape (1, 1, 2H, 2W), already ifftshift'ed."""
    _, _, H, W = shape
    Hp, Wp = 2 * H, 2 * W
    dy, dx = feature_size
    y_len, x_len = dy * Hp, dx * Wp
    fy = np.linspace(-1.0 / (2 * dy) + 0.5 / (2 * y_len),
                     1.0 / (2 * dy) - 0.5 / (2 * y_len), Hp)
    fx = np.linspace(-1.0 / (2 * dx) + 0.5 / (2 * x_len),
                     1.0 / (2 * dx) - 0.5 / (2 * x_len), Wp)
    FX, FY = np.meshgrid(fx, fy)
    HH = 2.0 * np.pi * np.sqrt(np.maximum(1.0 / wavelength ** 2 - (FX ** 2 + FY ** 2), 0.0))
    H_exp = HH * z
    fy_max = 1.0 / np.sqrt((2 * z * (1.0 / y_len)) ** 2 + 1) / wavelength
    fx_max = 1.0 / np.sqrt((2 * z * (1.0 / x_len)) ** 2 + 1) / wavelength
    H_filter = ((np.abs(FX) < fx_max) & (np.abs(FY) < fy_max)).astype(np.float64)
    Hc = np.fft.ifftshift(H_filter * np.exp(1j * H_exp))
    return jnp.asarray(Hc, jnp.complex64).reshape(1, 1, Hp, Wp)


def propagate_asm(field_real, field_imag, Hc):
    B, C, H, W = field_real.shape
    Hp, Wp = Hc.shape[-2:]
    ph, pw = (Hp - H) // 2, (Wp - W) // 2
    pad = ((0, 0), (0, 0), (ph, Hp - H - ph), (pw, Wp - W - pw))
    # TODO(synk): fusing the zero-pad into the Pallas producers needs non-block-aligned
    # row/col offsets (e.g. 540/960 at 1080p) that BlockSpec block indexing can't express;
    # the pad stays in XLA.
    real_p = jnp.pad(field_real, pad)
    if field_imag is None:                                # zero-phase fast path
        u = lax.complex(real_p, jnp.zeros_like(real_p))
    else:
        u = lax.complex(real_p, jnp.pad(field_imag, pad))
    # TODO(synk): 2-D FFT/IFFT have no Pallas TPU primitive; they stay in jnp.fft (XLA).
    # The reference's spatial ifftshift (pre-FFT) / fftshift (post-IFFT) cancel exactly
    # for even padded sizes (always 2H x 2W here), so both passes are dropped.
    U1 = jnp.fft.fftn(u, axes=(-2, -1), norm="ortho")
    U2 = U1 * Hc                                          # fused XLA complex multiply
    u_out = jnp.fft.ifftn(U2, axes=(-2, -1), norm="ortho")
    u_out = u_out[..., ph:ph + H, pw:pw + W]              # crop fused with re/im extraction
    return (jnp.real(u_out).astype(jnp.float32),
            jnp.imag(u_out).astype(jnp.float32))


# ----------------------------------------------------------------------------
# DPAC module equivalent
# ----------------------------------------------------------------------------

class DPAC:
    """Double-phase Amplitude Coding (JAX/Pallas port of the PyTorch module)."""

    def __init__(self, prop_dist, wavelength, feature_size, prop_model="ASM"):
        self.prop_dist = -prop_dist
        self.wavelength = wavelength
        self.feature_size = feature_size
        self.prop_model = prop_model
        self.precomputed_H = None
        self._H_shape = None

    def __call__(self, target_amp, target_phase=None):
        if self.prop_model == "ASM" and (
            self.precomputed_H is None or self._H_shape != target_amp.shape
        ):
            self.precomputed_H = asm_precompute_H(
                target_amp.shape, self.feature_size, self.wavelength, self.prop_dist
            )
            self._H_shape = target_amp.shape
        if target_phase is None:
            # zero phase => real = amp, imag = 0; skip polar_to_rect entirely
            real, imag = target_amp.astype(jnp.float32), None
        else:
            real, imag = polar_to_rect(target_amp, target_phase)
        # propagate to the SLM plane (FFT glue + fused complex multiply in XLA)
        fr, fi = propagate_asm(real, imag, self.precomputed_H)
        # double-phase coding (3 tiled Pallas passes), three_pi=False, mean_adjust=True
        final_phase = double_phase(fr, fi, three_pi=False, mean_adjust=True)
        return None, final_phase


if __name__ == "__main__":
    key = jax.random.PRNGKey(0)
    B, C, H, W = 2, 1, 16, 16
    k1, k2 = jax.random.split(key)
    target_amp = jax.random.uniform(k1, (B, C, H, W), jnp.float32, 0.1, 1.0)
    target_phase = jax.random.uniform(k2, (B, C, H, W), jnp.float32, -math.pi, math.pi)

    dpac = DPAC(prop_dist=1e-3, wavelength=5.2e-7, feature_size=(6.4e-6, 6.4e-6))
    _, final_phase = dpac(target_amp, target_phase)
    final_phase = jax.block_until_ready(final_phase)

    assert final_phase.shape == (B, C, H, W)
    assert final_phase.dtype == jnp.float32
    assert bool(jnp.all(jnp.isfinite(final_phase)))
    # output is wrapped to [-pi, pi)
    assert bool(jnp.all(final_phase >= -math.pi - 1e-5))
    assert bool(jnp.all(final_phase <= math.pi + 1e-5))

    # also exercise the zero-phase fast path
    _, fp0 = dpac(target_amp)
    fp0 = jax.block_until_ready(fp0)
    assert fp0.shape == (B, C, H, W) and bool(jnp.all(jnp.isfinite(fp0)))

    print("KERNEL_OK")
</pallas_src>

<mosaic_0001>
module attributes {stable_mosaic.version = 11 : i64} {
  func.func @_polar_to_rect_kernel(%arg0: i32, %arg1: i32, %arg2: memref<1x16x16xf32, #tpu.memory_space<vmem>>, %arg3: memref<1x16x16xf32, #tpu.memory_space<vmem>>, %arg4: memref<1x16x16xf32, #tpu.memory_space<vmem>>, %arg5: memref<1x16x16xf32, #tpu.memory_space<vmem>>) attributes {dimension_semantics = [#tpu.dimension_semantics<parallel>, #tpu.dimension_semantics<parallel>], iteration_bounds = array<i64: 2, 1>, scalar_prefetch = 0 : i64, scratch_operands = 0 : i64, tpu.core_type = #tpu.core_type<tc>, window_params = [{transform_indices = @transform_0, window_bounds = array<i64: 1, 16, 16>}, {transform_indices = @transform_1, window_bounds = array<i64: 1, 16, 16>}, {transform_indices = @transform_2, window_bounds = array<i64: 1, 16, 16>}, {transform_indices = @transform_3, window_bounds = array<i64: 1, 16, 16>}]} {
    %c0 = arith.constant 0 : index
    %c0_0 = arith.constant 0 : index
    %c0_1 = arith.constant 0 : index
    %0 = vector.load %arg2[%c0, %c0_0, %c0_1] : memref<1x16x16xf32, #tpu.memory_space<vmem>>, vector<1x16x16xf32>
    %c0_2 = arith.constant 0 : index
    %c0_3 = arith.constant 0 : index
    %c0_4 = arith.constant 0 : index
    %1 = vector.load %arg3[%c0_2, %c0_3, %c0_4] : memref<1x16x16xf32, #tpu.memory_space<vmem>>, vector<1x16x16xf32>
    %2 = math.cos %1 : vector<1x16x16xf32>
    %3 = arith.mulf %0, %2 : vector<1x16x16xf32>
    %c0_5 = arith.constant 0 : index
    %c0_6 = arith.constant 0 : index
    %c0_7 = arith.constant 0 : index
    %4 = vector.load %arg4[%c0_5, %c0_6, %c0_7] : memref<1x16x16xf32, #tpu.memory_space<vmem>>, vector<1x16x16xf32>
    tpu.vector_store %arg4[%c0_5, %c0_6, %c0_7], %3 {strides = array<i32>} : memref<1x16x16xf32, #tpu.memory_space<vmem>>, vector<1x16x16xf32>,
    %5 = math.sin %1 : vector<1x16x16xf32>
    %6 = arith.mulf %0, %5 : vector<1x16x16xf32>
    %c0_8 = arith.constant 0 : index
    %c0_9 = arith.constant 0 : index
    %c0_10 = arith.constant 0 : index
    %7 = vector.load %arg5[%c0_8, %c0_9, %c0_10] : memref<1x16x16xf32, #tpu.memory_space<vmem>>, vector<1x16x16xf32>
    tpu.vector_store %arg5[%c0_8, %c0_9, %c0_10], %6 {strides = array<i32>} : memref<1x16x16xf32, #tpu.memory_space<vmem>>, vector<1x16x16xf32>,
    return
  }
  func.func @transform_0(%arg0: i32, %arg1: i32) -> (i32, i32, i32) {
    %c0_i32 = arith.constant 0 : i32
    %c0_i32_0 = arith.constant 0 : i32
    return %arg0, %arg1, %c0_i32 : i32, i32, i32
  }
  func.func @transform_1(%arg0: i32, %arg1: i32) -> (i32, i32, i32) {
    %c0_i32 = arith.constant 0 : i32
    %c0_i32_0 = arith.constant 0 : i32
    return %arg0, %arg1, %c0_i32 : i32, i32, i32
  }
  func.func @transform_2(%arg0: i32, %arg1: i32) -> (i32, i32, i32) {
    %c0_i32 = arith.constant 0 : i32
    %c0_i32_0 = arith.constant 0 : i32
    return %arg0, %arg1, %c0_i32 : i32, i32, i32
  }
  func.func @transform_3(%arg0: i32, %arg1: i32) -> (i32, i32, i32) {
    %c0_i32 = arith.constant 0 : i32
    %c0_i32_0 = arith.constant 0 : i32
    return %arg0, %arg1, %c0_i32 : i32, i32, i32
  }
}

</mosaic_0001>

<llo_original>
// kernel: tpu_custom_call.1
$region0: #{tpu_custom_call.1}
  #allocation0 [shape = 'u32[]', space=smem, size = 0x4, offset = 0x4, fixed_abs, tag = 'smem constant byte address 0x4 - core index']
  #allocation1 [shape = 'u32[144,128]{1,0:T(1,128)}', space=vmem, size = 0x12000, scoped, tag = 'internal scratch']
  %s0 = inlined_call_operand.hbm [shape: f32[2,16,16], index: 0, kind: input, shape index: {}]
  %s1 = inlined_call_operand.hbm [shape: f32[2,16,16], index: 1, kind: input, shape index: {}]
  %s2 = inlined_call_operand.hbm [shape: f32[2,16,16], index: 2, kind: output, shape index: {0}]
  %s3 = inlined_call_operand.hbm [shape: f32[2,16,16], index: 3, kind: output, shape index: {1}]
  %4 = xla_tuple %s2, %s3
  %s5 = sld [smem:[#allocation0]]
  $region57: #{tpu_custom_call.1} parent=0
    _
  %s7 = ssub.s32 1, %s5
  %s8 = scalar_select 0, %s7, %s5
  $region1: #{tpu_custom_call.1} parent=0
    #allocation2 [shape = 'u8[16384]{0}', space=vmem, size = 0x4000, scoped, tag = 'input window, operand 0']
    #allocation3 [shape = 's32[2]{0}', space=sflag, size = 0x8, scoped, tag = 'scoped memory for tpu_custom_call.1']
    #allocation4 [shape = 's32[2]{0}', space=sflag, size = 0x8, scoped, tag = 'scoped memory for tpu_custom_call.1']
    #allocation5 [shape = 'u8[16384]{0}', space=vmem, size = 0x4000, scoped, tag = 'input window, operand 1']
    #allocation6 [shape = 's32[2]{0}', space=sflag, size = 0x8, scoped, tag = 'scoped memory for tpu_custom_call.1']
    #allocation7 [shape = 'u8[16384]{0}', space=vmem, size = 0x4000, scoped, tag = 'output window, operand 0']
    #allocation8 [shape = 'u8[16384]{0}', space=vmem, size = 0x4000, scoped, tag = 'output window, operand 1']
    #allocation9 [shape = 's32[2]{0}', space=sflag, size = 0x8, scoped, tag = 'scoped memory for tpu_custom_call.1']
    %9 = vsyncpa [#allocation3], 0
    %s10 = scalar_lea.sflag [#allocation3], 1
    %11 = vsyncpa %s10, 0
    %12 = vsyncpa [#allocation6], 0
    %s13 = scalar_lea.sflag [#allocation6], 1
    %14 = vsyncpa %s13, 0
    %15 = vsyncpa [#allocation4], 0
    %s16 = scalar_lea.sflag [#allocation4], 1
    %17 = vsyncpa %s16, 0
    %18 = vsyncpa [#allocation9], 0
    %s19 = scalar_lea.sflag [#allocation9], 1
    %20 = vsyncpa %s19, 0
    loop: start=0, step=1, limit=4
    $region2: #{tpu_custom_call.1} parent=1 // loop_pre_header
      _
    $region3: #{tpu_custom_call.1} parent=1 // loop_header
      %s22 = sphi 0, %s26
      %p23 = scmp.ge.s32.totalorder %s22, 4
      %s29 = sphi 0, %s41
      %s30 = sphi 0, %s37
      %s31 = sphi 0, %s29
      %s32 = sphi 0, %s30
      %s33 = sphi 0, %s31
      %s34 = sphi 0, %s32
      %s46 = sphi 0, %s48
      %s49 = sphi 0, %s46
      %s50 = sphi 0, %s49
      %s66 = sphi 0, %s50
      %s74 = sphi 0, %s76
      %s77 = sphi 0, %s74
      %s78 = sphi 0, %s77
      %s94 = sphi 0, %s78
      %s102 = sphi 0, %s104
      %s105 = sphi 0, %s102
      %s106 = sphi 0, %s105
      %s122 = sphi 0, %s106
      %s130 = sphi 0, %s132
      %s133 = sphi 0, %s130
      %s134 = sphi 0, %s133
      %s150 = sphi 0, %s134
    $region4: #{tpu_custom_call.1} parent=1 // loop_header_branch
      %25 = sbr.rel (%p23) target = $region8
    $region5: #{tpu_custom_call.1} parent=1 // loop_body
      %s27 = ssub.s32 %s22, 1
      %s28 = ssub.s32 %s22, 2
      %s35 = sadd.s32 1, %s30
      %p36 = scmp.ge.s32.totalorder %s35, 1
      %s37 = scalar_select %p36, 0, %s35
      %s38 = sadd.s32 1, %s29
      %s39 = scalar_select %p36, %s38, %s29
      %p40 = scmp.ge.s32.totalorder %s39, 2
      %s41 = scalar_select %p40, 0, %s39
      %s42 = ssub.s32 %s29, %s41
      %s43 = ssub.s32 %s30, %s37
      %s44 = sor.u32 %s42, %s43
      %p45 = scmp.eq.s32.totalorder %s44, 0
      %s47 = sadd.s32 %s46, 1
      %s48 = scalar_select %p45, %s46, %s47
      %p51 = pneg %p45
      %p52 = scmp.eq.s32.totalorder %s22, 1
      %p53 = por %p51, %p52
      %p54 = scmp.ne.s32.totalorder %s46, %s49
      %p55 = scmp.eq.s32.totalorder %s22, 0
      %p56 = por %p54, %p55
      %p57 = scmp.ne.s32.totalorder %s46, %s49
      %p58 = scmp.eq.s32.totalorder %s27, 1
      %p59 = por %p57, %p58
      %p60 = scmp.ne.s32.totalorder %s49, %s50
      %p61 = scmp.eq.s32.totalorder %s27, 0
      %p62 = por %p60, %p61
      %p63 = scmp.ne.s32.totalorder %s49, %s50
      %p64 = scmp.eq.s32.totalorder %s28, 1
      %p65 = por %p63, %p64
      %p67 = scmp.ne.s32.totalorder %s50, %s66
      %p68 = scmp.eq.s32.totalorder %s28, 0
      %p69 = por %p67, %p68
      %s70 = ssub.s32 %s29, %s41
      %s71 = ssub.s32 %s30, %s37
      %s72 = sor.u32 %s70, %s71
      %p73 = scmp.eq.s32.totalorder %s72, 0
      %s75 = sadd.s32 %s74, 1
      %s76 = scalar_select %p73, %s74, %s75
      %p79 = pneg %p73
      %p80 = scmp.eq.s32.totalorder %s22, 1
      %p81 = por %p79, %p80
      %p82 = scmp.ne.s32.totalorder %s74, %s77
      %p83 = scmp.eq.s32.totalorder %s22, 0
      %p84 = por %p82, %p83
      %p85 = scmp.ne.s32.totalorder %s74, %s77
      %p86 = scmp.eq.s32.totalorder %s27, 1
      %p87 = por %p85, %p86
      %p88 = scmp.ne.s32.totalorder %s77, %s78
      %p89 = scmp.eq.s32.totalorder %s27, 0
      %p90 = por %p88, %p89
      %p91 = scmp.ne.s32.totalorder %s77, %s78
      %p92 = scmp.eq.s32.totalorder %s28, 1
      %p93 = por %p91, %p92
      %p95 = scmp.ne.s32.totalorder %s78, %s94
      %p96 = scmp.eq.s32.totalorder %s28, 0
      %p97 = por %p95, %p96
      %s98 = ssub.s32 %s29, %s41
      %s99 = ssub.s32 %s30, %s37
      %s100 = sor.u32 %s98, %s99
      %p101 = scmp.eq.s32.totalorder %s100, 0
      %s103 = sadd.s32 %s102, 1
      %s104 = scalar_select %p101, %s102, %s103
      %p107 = pneg %p101
      %p108 = scmp.eq.s32.totalorder %s22, 1
      %p109 = por %p107, %p108
      %p110 = scmp.ne.s32.totalorder %s102, %s105
      %p111 = scmp.eq.s32.totalorder %s22, 0
      %p112 = por %p110, %p111
      %p113 = scmp.ne.s32.totalorder %s102, %s105
      %p114 = scmp.eq.s32.totalorder %s27, 1
      %p115 = por %p113, %p114
      %p116 = scmp.ne.s32.totalorder %s105, %s106
      %p117 = scmp.eq.s32.totalorder %s27, 0
      %p118 = por %p116, %p117
      %p119 = scmp.ne.s32.totalorder %s105, %s106
      %p120 = scmp.eq.s32.totalorder %s28, 1
      %p121 = por %p119, %p120
      %p123 = scmp.ne.s32.totalorder %s106, %s122
      %p124 = scmp.eq.s32.totalorder %s28, 0
      %p125 = por %p123, %p124
      %s126 = ssub.s32 %s29, %s41
      %s127 = ssub.s32 %s30, %s37
      %s128 = sor.u32 %s126, %s127
      %p129 = scmp.eq.s32.totalorder %s128, 0
      %s131 = sadd.s32 %s130, 1
      %s132 = scalar_select %p129, %s130, %s131
      %p135 = pneg %p129
      %p136 = scmp.eq.s32.totalorder %s22, 1
      %p137 = por %p135, %p136
      %p138 = scmp.ne.s32.totalorder %s130, %s133
      %p139 = scmp.eq.s32.totalorder %s22, 0
      %p140 = por %p138, %p139
      %p141 = scmp.ne.s32.totalorder %s130, %s133
      %p142 = scmp.eq.s32.totalorder %s27, 1
      %p143 = por %p141, %p142
      %p144 = scmp.ne.s32.totalorder %s133, %s134
      %p145 = scmp.eq.s32.totalorder %s27, 0
      %p146 = por %p144, %p145
      %p147 = scmp.ne.s32.totalorder %s133, %s134
      %p148 = scmp.eq.s32.totalorder %s28, 1
      %p149 = por %p147, %p148
      %p151 = scmp.ne.s32.totalorder %s134, %s150
      %p152 = scmp.eq.s32.totalorder %s28, 0
      %p153 = por %p151, %p152
      %p154 = scmp.le.s32.totalorder 1, %s22
      %p155 = scmp.lt.s32.totalorder %s22, 3
      %p156 = pnand %p154, %p155
      %p157 = pneg %p156
      // Predicated region
      $region9: #{tpu_custom_call.1} parent=5 // pred_check
        _
      $region10: #{tpu_custom_call.1} parent=5 // pred_check_branch
        %159 = sbr.rel (%p156) target = $region12
      $region11: #{tpu_custom_call.1} parent=5 // pred_region
        %s160 = ssub.s32 %s22, 1
      $region12: #{tpu_custom_call.1} parent=5 // pred_fallthru
        _
      %p161 = scmp.lt.s32.totalorder %s22, 2
      // Predicated region
      $region13: #{tpu_custom_call.1} parent=5 // pred_check
        %p162 = pneg %p161
      $region14: #{tpu_custom_call.1} parent=5 // pred_check_branch
        %164 = sbr.rel (%p162) target = $region16
      $region15: #{tpu_custom_call.1} parent=5 // pred_region
        // Predicated region
        $region17: #{tpu_custom_call.1} parent=15 // pred_check
          %p165 = pneg %p56
        $region18: #{tpu_custom_call.1} parent=15 // pred_check_branch
          %167 = sbr.rel (%p165) target = $region20
        $region19: #{tpu_custom_call.1} parent=15 // pred_region
          %s168 = sand.u32 %s46, 1
          %s169 = scalar_lea.sflag [#allocation3], %s168
          %s170 = sand.u32 %s46, 1
          %s171 = smul.addr %s170, 16
          %s172 = scalar_lea.vmem [#allocation2], %s171
          %s173 = smul.u32 2, %s30
          %s175 = ssub.s32 256, 256
          %176 = vsyncadd %s169, %s175
          %s177 = smul.addr %s29, 2
          %s178 = sadd.s32 %s173, %s177
          %s179 = smul.addr %s178, 128
          %s180 = scalar_lea.hbm %s0, %s179
          %s181 = sshll.u32 %s172, 4
          %s182 = int_to_ptr.vmem [resolvable:$true] %s181
          %187 = dma.hbm_to_vmem [thread:$0]  %s180, 256, %s182, %s169, 128, 128, 8
        $region20: #{tpu_custom_call.1} parent=15 // pred_fallthru
          _
        // Predicated region
        $region21: #{tpu_custom_call.1} parent=15 // pred_check
          %p188 = pneg %p84
        $region22: #{tpu_custom_call.1} parent=15 // pred_check_branch
          %190 = sbr.rel (%p188) target = $region24
        $region23: #{tpu_custom_call.1} parent=15 // pred_region
          %s191 = sand.u32 %s74, 1
          %s192 = scalar_lea.sflag [#allocation6], %s191
          %s193 = sand.u32 %s74, 1
          %s194 = smul.addr %s193, 16
          %s195 = scalar_lea.vmem [#allocation5], %s194
          %s196 = smul.u32 2, %s30
          %s198 = ssub.s32 256, 256
          %199 = vsyncadd %s192, %s198
          %s200 = smul.addr %s29, 2
          %s201 = sadd.s32 %s196, %s200
          %s202 = smul.addr %s201, 128
          %s203 = scalar_lea.hbm %s1, %s202
          %s204 = sshll.u32 %s195, 4
          %s205 = int_to_ptr.vmem [resolvable:$true] %s204
          %210 = dma.hbm_to_vmem [thread:$0]  %s203, 256, %s205, %s192, 128, 128, 8
        $region24: #{tpu_custom_call.1} parent=15 // pred_fallthru
          _
      $region16: #{tpu_custom_call.1} parent=5 // pred_fallthru
        _
      %p211 = scmp.le.s32.totalorder 1, %s22
      %p212 = scmp.lt.s32.totalorder %s22, 3
      %p213 = pnand %p211, %p212
      %p214 = pneg %p213
      // Predicated region
      $region25: #{tpu_custom_call.1} parent=5 // pred_check
        _
      $region26: #{tpu_custom_call.1} parent=5 // pred_check_branch
        %216 = sbr.rel (%p213) target = $region28
      $region27: #{tpu_custom_call.1} parent=5 // pred_region
        %s217 = ssub.s32 %s22, 1
        %s218 = sand.u32 %s49, 1
        %s219 = scalar_lea.sflag [#allocation3], %s218
        %s220 = sand.u32 %s49, 1
        %s221 = smul.addr %s220, 16
        %s222 = scalar_lea.vmem [#allocation2], %s221
        // Predicated region
        $region29: #{tpu_custom_call.1} parent=27 // pred_check
          %p223 = pneg %p62
        $region30: #{tpu_custom_call.1} parent=27 // pred_check_branch
          %225 = sbr.rel (%p223) target = $region32
        $region31: #{tpu_custom_call.1} parent=27 // pred_region
          %226 = dma.done %s219, 256
        $region32: #{tpu_custom_call.1} parent=27 // pred_fallthru
          _
        %s227 = sand.u32 %s77, 1
        %s228 = scalar_lea.sflag [#allocation6], %s227
        %s229 = sand.u32 %s77, 1
        %s230 = smul.addr %s229, 16
        %s231 = scalar_lea.vmem [#allocation5], %s230
        // Predicated region
        $region33: #{tpu_custom_call.1} parent=27 // pred_check
          %p232 = pneg %p90
        $region34: #{tpu_custom_call.1} parent=27 // pred_check_branch
          %234 = sbr.rel (%p232) target = $region36
        $region35: #{tpu_custom_call.1} parent=27 // pred_region
          %235 = dma.done %s228, 256
        $region36: #{tpu_custom_call.1} parent=27 // pred_fallthru
          _
        %s236 = sand.u32 %s49, 1
        %s237 = scalar_lea.sflag [#allocation3], %s236
        %s238 = sand.u32 %s49, 1
        %s239 = smul.addr %s238, 16
        %s240 = scalar_lea.vmem [#allocation2], %s239
        %p241 = pneg %p62
        %p242 = pneg %p59
        %s243 = sand.u32 %s77, 1
        %s244 = scalar_lea.sflag [#allocation6], %s243
        %s245 = sand.u32 %s77, 1
        %s246 = smul.addr %s245, 16
        %s247 = scalar_lea.vmem [#allocation5], %s246
        %p248 = pneg %p90
        %p249 = pneg %p87
        %p250 = pneg %p118
        %p251 = pneg %p115
        %s252 = sand.u32 %s105, 1
        %s253 = scalar_lea.sflag [#allocation4], %s252
        %s254 = sand.u32 %s105, 1
        %s255 = smul.addr %s254, 16
        %s256 = scalar_lea.vmem [#allocation7], %s255
        %p257 = pneg %p146
        %p258 = pneg %p143
        %s259 = sand.u32 %s133, 1
        %s260 = scalar_lea.sflag [#allocation9], %s259
        %s261 = sand.u32 %s133, 1
        %s262 = smul.addr %s261, 16
        %s263 = scalar_lea.vmem [#allocation8], %s262
        %s264 = smul.u32 2, %s32
        %s265 = smul.u32 2, %s32
        %s266 = smul.u32 2, %s32
        %s267 = smul.u32 2, %s32
        %v268 = vld [vmem:[%s222] sm:$0xff]
        %v269 = vld [vmem:[%s222 + $0x8] sm:$0xff]
        %v270 = vld [vmem:[%s231] sm:$0xff]
        %v271 = vld [vmem:[%s231 + $0x8] sm:$0xff]
        %v272 = vand.u32 2147483647, %v270
        %vm273 = vcmp.le.f32.partialorder %v272, 0.7853982
        %vm274 = vcmp.lt.s32.totalorder %v270, 0
        %v275 = vand.u32 %v270, 2139095040
        %v276 = vshrl.u32 %v275, 23
        %v277 = vsub.s32 %v276, 127
        %v278 = vand.u32 2147483647, %v270
        %v279 = vand.u32 %v278, 8388607
        %v280 = vor.u32 %v279, 8388608
        %v281 = vsub.s32 0, %v280
        %v282 = vadd.s32 %v277, 1
        %vm283 = vcmp.gt.s32.totalorder %v282, 0
        %v284 = vsel %vm283, %v282, 0
        %v285 = vshrl.u32 %v284, 5
        %v286 = vand.u32 %v284, 31
        %v287 = vsub.s32 32, %v286
        %v288 = vshrl.u32 683565275, %v287
        %v289 = vshll.u32 683565275, %v286
        %v290 = vshrl.u32 2475754826, %v287
        %v291 = vor.u32 %v289, %v290
        %v292 = vshll.u32 2475754826, %v286
        %v293 = vshrl.u32 2131351028, %v287
        %v294 = vor.u32 %v292, %v293
        %v295 = vshll.u32 2131351028, %v286
        %v296 = vshrl.u32 2102212464, %v287
        %v297 = vor.u32 %v295, %v296
        %v298 = vshll.u32 2102212464, %v286
        %v299 = vshrl.u32 920167782, %v287
        %v300 = vor.u32 %v298, %v299
        %v301 = vshll.u32 920167782, %v286
        %v302 = vshrl.u32 1326507024, %v287
        %v303 = vor.u32 %v301, %v302
        %vm304 = vcmp.lt.s32.totalorder %v285, 1
        %vm305 = vcmp.lt.s32.totalorder %v285, 2
        %vm306 = vcmp.lt.s32.totalorder %v285, 3
        %vm307 = vcmp.lt.s32.totalorder %v285, 4
        %v308 = vsel %vm304, %v288, %v291
        %v309 = vsel %vm307, %v297, 2102212464
        %v310 = vsel %vm306, %v294, %v309
        %v311 = vsel %vm305, %v308, %v310
        %v312 = vsel %vm304, %v291, %v294
        %v313 = vsel %vm307, %v300, 920167782
        %v314 = vsel %vm306, %v297, %v313
        %v315 = vsel %vm305, %v312, %v314
        %v316 = vsel %vm304, %v294, %v297
        %v317 = vsel %vm307, %v303, 1326507024
        %v318 = vsel %vm306, %v300, %v317
        %v319 = vsel %vm305, %v316, %v318
        %v320 = vshll.u32 %v280, 8
        %v321 = vmul.u32.u64.compose %v320, %v319
        %v322 = vextract.low.u32 %v321
        %v323 = vextract.high.u32 %v321
        %v324 = vmul.u32.u64.compose %v320, %v315
        %v325 = vextract.low.u32 %v324
        %v326 = vextract.high.u32 %v324
        %v327 = vmul.u32 %v320, %v311
        %v328 = vadd.s32 %v323, %v325
        %vm329 = vc.u32 %v323, %v325
        %v330 = vadd.s32 %v326, 1
        %v331 = vsel %vm329, %v330, %v326
        %v332 = vadd.s32 %v327, %v331
        %v333 = vadd.s32 %v332, 536870912
        %v334 = vshrl.u32 %v333, 30
        %v335 = vshll.u32 %v334, 30
        %v336 = vsub.s32 %v332, %v335
        %vm337 = vcmp.lt.s32.totalorder %v336, 0
        %v338 = vsub.s32 0, %v336
        %v339 = vsel %vm337, %v338, %v336
        %v340 = vclz %v339
        %v341 = vsub.s32 %v340, 2
        %vm342 = vcmp.gt.s32.totalorder 0, %v341
        %v343 = vsel %vm342, 0, %v341
        %v344 = vsub.s32 32, %v343
        %v345 = vshll.u32 %v336, %v343
        %v346 = vshrl.u32 %v328, %v344
        %v347 = vor.u32 %v345, %v346
        %v348 = vsub.s32 4294967266, %v343
        %v349 = vadd.s32 %v348, 127
        %v350 = vshll.u32 %v349, 23
        %v351 = vor.u32 4788187, %v350
        %v352 = vand.u32 2147483647, %v351
        %v354 = vcvt.s32.f32 %v347
        %v355 = vmul.f32 %v354, %v352
        %v356 = vxor.u32 %v355, 2147483648
        %v357 = vsel %vm274, %v356, %v355
        %v358 = vsub.s32 4, %v334
        %v359 = vsel %vm274, %v358, %v334
        %v360 = vsel %vm273, %v270, %v357
        %v361 = vsel %vm273, 0, %v359
        %v362 = vcosq.f32.pop %v360
        %v363 = vsinq.f32.pop %v360
        %vm364 = vweird.f32 %v270
        %v365 = vand.u32 %v361, 3
        %vm366 = vcmp.lt.s32.totalorder %v365, 2
        %vm367 = vcmp.eq.s32.totalorder %v365, 0
        %v368 = vxor.u32 %v363, 2147483648
        %v369 = vsel %vm367, %v362, %v368
        %vm370 = vcmp.eq.s32.totalorder %v365, 2
        %v371 = vxor.u32 %v362, 2147483648
        %v372 = vsel %vm370, %v371, %v363
        %v373 = vsel %vm366, %v369, %v372
        %v374 = vsel %vm364, nan, %v373
        %v375 = vand.u32 2147483647, %v271
        %vm376 = vcmp.le.f32.partialorder %v375, 0.7853982
        %vm377 = vcmp.lt.s32.totalorder %v271, 0
        %v378 = vand.u32 %v271, 2139095040
        %v379 = vshrl.u32 %v378, 23
        %v380 = vsub.s32 %v379, 127
        %v381 = vand.u32 2147483647, %v271
        %v382 = vand.u32 %v381, 8388607
        %v383 = vor.u32 %v382, 8388608
        %v384 = vsub.s32 0, %v383
        %v385 = vadd.s32 %v380, 1
        %vm386 = vcmp.gt.s32.totalorder %v385, 0
        %v387 = vsel %vm386, %v385, 0
        %v388 = vshrl.u32 %v387, 5
        %v389 = vand.u32 %v387, 31
        %v390 = vsub.s32 32, %v389
        %v391 = vshrl.u32 683565275, %v390
        %v392 = vshll.u32 683565275, %v389
        %v393 = vshrl.u32 2475754826, %v390
        %v394 = vor.u32 %v392, %v393
        %v395 = vshll.u32 2475754826, %v389
        %v396 = vshrl.u32 2131351028, %v390
        %v397 = vor.u32 %v395, %v396
        %v398 = vshll.u32 2131351028, %v389
        %v399 = vshrl.u32 2102212464, %v390
        %v400 = vor.u32 %v398, %v399
        %v401 = vshll.u32 2102212464, %v389
        %v402 = vshrl.u32 920167782, %v390
        %v403 = vor.u32 %v401, %v402
        %v404 = vshll.u32 920167782, %v389
        %v405 = vshrl.u32 1326507024, %v390
        %v406 = vor.u32 %v404, %v405
        %vm407 = vcmp.lt.s32.totalorder %v388, 1
        %vm408 = vcmp.lt.s32.totalorder %v388, 2
        %vm409 = vcmp.lt.s32.totalorder %v388, 3
        %vm410 = vcmp.lt.s32.totalorder %v388, 4
        %v411 = vsel %vm407, %v391, %v394
        %v412 = vsel %vm410, %v400, 2102212464
        %v413 = vsel %vm409, %v397, %v412
        %v414 = vsel %vm408, %v411, %v413
        %v415 = vsel %vm407, %v394, %v397
        %v416 = vsel %vm410, %v403, 920167782
        %v417 = vsel %vm409, %v400, %v416
        %v418 = vsel %vm408, %v415, %v417
        %v419 = vsel %vm407, %v397, %v400
        %v420 = vsel %vm410, %v406, 1326507024
        %v421 = vsel %vm409, %v403, %v420
        %v422 = vsel %vm408, %v419, %v421
        %v423 = vshll.u32 %v383, 8
        %v424 = vmul.u32.u64.compose %v423, %v422
        %v425 = vextract.low.u32 %v424
        %v426 = vextract.high.u32 %v424
        %v427 = vmul.u32.u64.compose %v423, %v418
        %v428 = vextract.low.u32 %v427
        %v429 = vextract.high.u32 %v427
        %v430 = vmul.u32 %v423, %v414
        %v431 = vadd.s32 %v426, %v428
        %vm432 = vc.u32 %v426, %v428
        %v433 = vadd.s32 %v429, 1
        %v434 = vsel %vm432, %v433, %v429
        %v435 = vadd.s32 %v430, %v434
        %v436 = vadd.s32 %v435, 536870912
        %v437 = vshrl.u32 %v436, 30
        %v438 = vshll.u32 %v437, 30
        %v439 = vsub.s32 %v435, %v438
        %vm440 = vcmp.lt.s32.totalorder %v439, 0
        %v441 = vsub.s32 0, %v439
        %v442 = vsel %vm440, %v441, %v439
        %v443 = vclz %v442
        %v444 = vsub.s32 %v443, 2
        %vm445 = vcmp.gt.s32.totalorder 0, %v444
        %v446 = vsel %vm445, 0, %v444
        %v447 = vsub.s32 32, %v446
        %v448 = vshll.u32 %v439, %v446
        %v449 = vshrl.u32 %v431, %v447
        %v450 = vor.u32 %v448, %v449
        %v451 = vsub.s32 4294967266, %v446
        %v452 = vadd.s32 %v451, 127
        %v453 = vshll.u32 %v452, 23
        %v454 = vor.u32 4788187, %v453
        %v455 = vand.u32 2147483647, %v454
        %v457 = vcvt.s32.f32 %v450
        %v458 = vmul.f32 %v457, %v455
        %v459 = vxor.u32 %v458, 2147483648
        %v460 = vsel %vm377, %v459, %v458
        %v461 = vsub.s32 4, %v437
        %v462 = vsel %vm377, %v461, %v437
        %v463 = vsel %vm376, %v271, %v460
        %v464 = vsel %vm376, 0, %v462
        %v465 = vcosq.f32.pop %v463
        %v466 = vsinq.f32.pop %v463
        %vm467 = vweird.f32 %v271
        %v468 = vand.u32 %v464, 3
        %vm469 = vcmp.lt.s32.totalorder %v468, 2
        %vm470 = vcmp.eq.s32.totalorder %v468, 0
        %v471 = vxor.u32 %v466, 2147483648
        %v472 = vsel %vm470, %v465, %v471
        %vm473 = vcmp.eq.s32.totalorder %v468, 2
        %v474 = vxor.u32 %v465, 2147483648
        %v475 = vsel %vm473, %v474, %v466
        %v476 = vsel %vm469, %v472, %v475
        %v477 = vsel %vm467, nan, %v476
        %v478 = vmul.f32 %v268, %v374
        %v479 = vmul.f32 %v269, %v477
        %vm480 = vcmask 130048
        %481 = vst.msk [vmem:[%s256] sm:$0xff] %vm480, %v478
        %482 = vst.msk [vmem:[%s256 + $0x8] sm:$0xff] %vm480, %v479
        %v483 = vand.u32 2147483647, %v270
        %vm484 = vcmp.le.f32.partialorder %v483, 0.7853982
        %vm485 = vcmp.lt.s32.totalorder %v270, 0
        %v486 = vand.u32 %v270, 2139095040
        %v487 = vshrl.u32 %v486, 23
        %v488 = vsub.s32 %v487, 127
        %v489 = vand.u32 2147483647, %v270
        %v490 = vand.u32 %v489, 8388607
        %v491 = vor.u32 %v490, 8388608
        %v492 = vsub.s32 0, %v491
        %v493 = vadd.s32 %v488, 1
        %vm494 = vcmp.gt.s32.totalorder %v493, 0
        %v495 = vsel %vm494, %v493, 0
        %v496 = vshrl.u32 %v495, 5
        %v497 = vand.u32 %v495, 31
        %v498 = vsub.s32 32, %v497
        %v499 = vshrl.u32 683565275, %v498
        %v500 = vshll.u32 683565275, %v497
        %v501 = vshrl.u32 2475754826, %v498
        %v502 = vor.u32 %v500, %v501
        %v503 = vshll.u32 2475754826, %v497
        %v504 = vshrl.u32 2131351028, %v498
        %v505 = vor.u32 %v503, %v504
        %v506 = vshll.u32 2131351028, %v497
        %v507 = vshrl.u32 2102212464, %v498
        %v508 = vor.u32 %v506, %v507
        %v509 = vshll.u32 2102212464, %v497
        %v510 = vshrl.u32 920167782, %v498
        %v511 = vor.u32 %v509, %v510
        %v512 = vshll.u32 920167782, %v497
        %v513 = vshrl.u32 1326507024, %v498
        %v514 = vor.u32 %v512, %v513
        %vm515 = vcmp.lt.s32.totalorder %v496, 1
        %vm516 = vcmp.lt.s32.totalorder %v496, 2
        %vm517 = vcmp.lt.s32.totalorder %v496, 3
        %vm518 = vcmp.lt.s32.totalorder %v496, 4
        %v519 = vsel %vm515, %v499, %v502
        %v520 = vsel %vm518, %v508, 2102212464
        %v521 = vsel %vm517, %v505, %v520
        %v522 = vsel %vm516, %v519, %v521
        %v523 = vsel %vm515, %v502, %v505
        %v524 = vsel %vm518, %v511, 920167782
        %v525 = vsel %vm517, %v508, %v524
        %v526 = vsel %vm516, %v523, %v525
        %v527 = vsel %vm515, %v505, %v508
        %v528 = vsel %vm518, %v514, 1326507024
        %v529 = vsel %vm517, %v511, %v528
        %v530 = vsel %vm516, %v527, %v529
        %v531 = vshll.u32 %v491, 8
        %v532 = vmul.u32.u64.compose %v531, %v530
        %v533 = vextract.low.u32 %v532
        %v534 = vextract.high.u32 %v532
        %v535 = vmul.u32.u64.compose %v531, %v526
        %v536 = vextract.low.u32 %v535
        %v537 = vextract.high.u32 %v535
        %v538 = vmul.u32 %v531, %v522
        %v539 = vadd.s32 %v534, %v536
        %vm540 = vc.u32 %v534, %v536
        %v541 = vadd.s32 %v537, 1
        %v542 = vsel %vm540, %v541, %v537
        %v543 = vadd.s32 %v538, %v542
        %v544 = vadd.s32 %v543, 536870912
        %v545 = vshrl.u32 %v544, 30
        %v546 = vshll.u32 %v545, 30
        %v547 = vsub.s32 %v543, %v546
        %vm548 = vcmp.lt.s32.totalorder %v547, 0
        %v549 = vsub.s32 0, %v547
        %v550 = vsel %vm548, %v549, %v547
        %v551 = vclz %v550
        %v552 = vsub.s32 %v551, 2
        %vm553 = vcmp.gt.s32.totalorder 0, %v552
        %v554 = vsel %vm553, 0, %v552
        %v555 = vsub.s32 32, %v554
        %v556 = vshll.u32 %v547, %v554
        %v557 = vshrl.u32 %v539, %v555
        %v558 = vor.u32 %v556, %v557
        %v559 = vsub.s32 4294967266, %v554
        %v560 = vadd.s32 %v559, 127
        %v561 = vshll.u32 %v560, 23
        %v562 = vor.u32 4788187, %v561
        %v563 = vand.u32 2147483647, %v562
        %v565 = vcvt.s32.f32 %v558
        %v566 = vmul.f32 %v565, %v563
        %v567 = vxor.u32 %v566, 2147483648
        %v568 = vsel %vm485, %v567, %v566
        %v569 = vsub.s32 4, %v545
        %v570 = vsel %vm485, %v569, %v545
        %v571 = vsel %vm484, %v270, %v568
        %v572 = vsel %vm484, 0, %v570
        %v573 = vcosq.f32.pop %v571
        %v574 = vsinq.f32.pop %v571
        %vm575 = vweird.f32 %v270
        %v576 = vadd.s32 %v572, 3
        %v577 = vand.u32 %v576, 3
        %vm578 = vcmp.lt.s32.totalorder %v577, 2
        %vm579 = vcmp.eq.s32.totalorder %v577, 0
        %v580 = vxor.u32 %v574, 2147483648
        %v581 = vsel %vm579, %v573, %v580
        %vm582 = vcmp.eq.s32.totalorder %v577, 2
        %v583 = vxor.u32 %v573, 2147483648
        %v584 = vsel %vm582, %v583, %v574
        %v585 = vsel %vm578, %v581, %v584
        %v586 = vsel %vm575, nan, %v585
        %v587 = vand.u32 2147483647, %v271
        %vm588 = vcmp.le.f32.partialorder %v587, 0.7853982
        %vm589 = vcmp.lt.s32.totalorder %v271, 0
        %v590 = vand.u32 %v271, 2139095040
        %v591 = vshrl.u32 %v590, 23
        %v592 = vsub.s32 %v591, 127
        %v593 = vand.u32 2147483647, %v271
        %v594 = vand.u32 %v593, 8388607
        %v595 = vor.u32 %v594, 8388608
        %v596 = vsub.s32 0, %v595
        %v597 = vadd.s32 %v592, 1
        %vm598 = vcmp.gt.s32.totalorder %v597, 0
        %v599 = vsel %vm598, %v597, 0
        %v600 = vshrl.u32 %v599, 5
        %v601 = vand.u32 %v599, 31
        %v602 = vsub.s32 32, %v601
        %v603 = vshrl.u32 683565275, %v602
        %v604 = vshll.u32 683565275, %v601
        %v605 = vshrl.u32 2475754826, %v602
        %v606 = vor.u32 %v604, %v605
        %v607 = vshll.u32 2475754826, %v601
        %v608 = vshrl.u32 2131351028, %v602
        %v609 = vor.u32 %v607, %v608
        %v610 = vshll.u32 2131351028, %v601
        %v611 = vshrl.u32 2102212464, %v602
        %v612 = vor.u32 %v610, %v611
        %v613 = vshll.u32 2102212464, %v601
        %v614 = vshrl.u32 920167782, %v602
        %v615 = vor.u32 %v613, %v614
        %v616 = vshll.u32 920167782, %v601
        %v617 = vshrl.u32 1326507024, %v602
        %v618 = vor.u32 %v616, %v617
        %vm619 = vcmp.lt.s32.totalorder %v600, 1
        %vm620 = vcmp.lt.s32.totalorder %v600, 2
        %vm621 = vcmp.lt.s32.totalorder %v600, 3
        %vm622 = vcmp.lt.s32.totalorder %v600, 4
        %v623 = vsel %vm619, %v603, %v606
        %v624 = vsel %vm622, %v612, 2102212464
        %v625 = vsel %vm621, %v609, %v624
        %v626 = vsel %vm620, %v623, %v625
        %v627 = vsel %vm619, %v606, %v609
        %v628 = vsel %vm622, %v615, 920167782
        %v629 = vsel %vm621, %v612, %v628
        %v630 = vsel %vm620, %v627, %v629
        %v631 = vsel %vm619, %v609, %v612
        %v632 = vsel %vm622, %v618, 1326507024
        %v633 = vsel %vm621, %v615, %v632
        %v634 = vsel %vm620, %v631, %v633
        %v635 = vshll.u32 %v595, 8
        %v636 = vmul.u32.u64.compose %v635, %v634
        %v637 = vextract.low.u32 %v636
        %v638 = vextract.high.u32 %v636
        %v639 = vmul.u32.u64.compose %v635, %v630
        %v640 = vextract.low.u32 %v639
        %v641 = vextract.high.u32 %v639
        %v642 = vmul.u32 %v635, %v626
        %v643 = vadd.s32 %v638, %v640
        %vm644 = vc.u32 %v638, %v640
        %v645 = vadd.s32 %v641, 1
        %v646 = vsel %vm644, %v645, %v641
        %v647 = vadd.s32 %v642, %v646
        %v648 = vadd.s32 %v647, 536870912
        %v649 = vshrl.u32 %v648, 30
        %v650 = vshll.u32 %v649, 30
        %v651 = vsub.s32 %v647, %v650
        %vm652 = vcmp.lt.s32.totalorder %v651, 0
        %v653 = vsub.s32 0, %v651
        %v654 = vsel %vm652, %v653, %v651
        %v655 = vclz %v654
        %v656 = vsub.s32 %v655, 2
        %vm657 = vcmp.gt.s32.totalorder 0, %v656
        %v658 = vsel %vm657, 0, %v656
        %v659 = vsub.s32 32, %v658
        %v660 = vshll.u32 %v651, %v658
        %v661 = vshrl.u32 %v643, %v659
        %v662 = vor.u32 %v660, %v661
        %v663 = vsub.s32 4294967266, %v658
        %v664 = vadd.s32 %v663, 127
        %v665 = vshll.u32 %v664, 23
        %v666 = vor.u32 4788187, %v665
        %v667 = vand.u32 2147483647, %v666
        %v669 = vcvt.s32.f32 %v662
        %v670 = vmul.f32 %v669, %v667
        %v671 = vxor.u32 %v670, 2147483648
        %v672 = vsel %vm589, %v671, %v670
        %v673 = vsub.s32 4, %v649
        %v674 = vsel %vm589, %v673, %v649
        %v675 = vsel %vm588, %v271, %v672
        %v676 = vsel %vm588, 0, %v674
        %v677 = vcosq.f32.pop %v675
        %v678 = vsinq.f32.pop %v675
        %vm679 = vweird.f32 %v271
        %v680 = vadd.s32 %v676, 3
        %v681 = vand.u32 %v680, 3
        %vm682 = vcmp.lt.s32.totalorder %v681, 2
        %vm683 = vcmp.eq.s32.totalorder %v681, 0
        %v684 = vxor.u32 %v678, 2147483648
        %v685 = vsel %vm683, %v677, %v684
        %vm686 = vcmp.eq.s32.totalorder %v681, 2
        %v687 = vxor.u32 %v677, 2147483648
        %v688 = vsel %vm686, %v687, %v678
        %v689 = vsel %vm682, %v685, %v688
        %v690 = vsel %vm679, nan, %v689
        %v691 = vmul.f32 %v268, %v586
        %v692 = vmul.f32 %v269, %v690
        %693 = vst.msk [vmem:[%s263] sm:$0xff] %vm480, %v691
        %694 = vst.msk [vmem:[%s263 + $0x8] sm:$0xff] %vm480, %v692
        %s695 = sand.u32 %s105, 1
        %s696 = scalar_lea.sflag [#allocation4], %s695
        %s697 = sand.u32 %s105, 1
        %s698 = smul.addr %s697, 16
        %s699 = scalar_lea.vmem [#allocation7], %s698
        %s700 = sand.u32 %s133, 1
        %s701 = scalar_lea.sflag [#allocation9], %s700
        %s702 = sand.u32 %s133, 1
        %s703 = smul.addr %s702, 16
        %s704 = scalar_lea.vmem [#allocation8], %s703
        // Predicated region
        $region37: #{tpu_custom_call.1} parent=27 // pred_check
          %p705 = pneg %p115
        $region38: #{tpu_custom_call.1} parent=27 // pred_check_branch
          %707 = sbr.rel (%p705) target = $region40
        $region39: #{tpu_custom_call.1} parent=27 // pred_region
          %s708 = smul.u32 2, %s32
          %s710 = ssub.s32 256, 256
          %711 = vsyncadd %s696, %s710
          %s712 = smul.addr %s31, 2
          %s713 = sadd.s32 %s708, %s712
          %s714 = smul.addr %s713, 128
          %s715 = scalar_lea.hbm %s2, %s714
          %s716 = sshll.u32 %s699, 4
          %s717 = int_to_ptr.vmem [resolvable:$true] %s716
          %722 = dma.vmem_to_hbm [thread:$0]  %s717, 256, %s715, %s696, 128, 128, 8
        $region40: #{tpu_custom_call.1} parent=27 // pred_fallthru
          _
        // Predicated region
        $region41: #{tpu_custom_call.1} parent=27 // pred_check
          %p723 = pneg %p143
        $region42: #{tpu_custom_call.1} parent=27 // pred_check_branch
          %725 = sbr.rel (%p723) target = $region44
        $region43: #{tpu_custom_call.1} parent=27 // pred_region
          %s726 = smul.u32 2, %s32
          %s728 = ssub.s32 256, 256
          %729 = vsyncadd %s701, %s728
          %s730 = smul.addr %s31, 2
          %s731 = sadd.s32 %s726, %s730
          %s732 = smul.addr %s731, 128
          %s733 = scalar_lea.hbm %s3, %s732
          %s734 = sshll.u32 %s704, 4
          %s735 = int_to_ptr.vmem [resolvable:$true] %s734
          %740 = dma.vmem_to_hbm [thread:$0]  %s735, 256, %s733, %s701, 128, 128, 8
        $region44: #{tpu_custom_call.1} parent=27 // pred_fallthru
          _
      $region28: #{tpu_custom_call.1} parent=5 // pred_fallthru
        _
      %p741 = scmp.le.s32.totalorder 2, %s22
      // Predicated region
      $region45: #{tpu_custom_call.1} parent=5 // pred_check
        %p742 = pneg %p741
      $region46: #{tpu_custom_call.1} parent=5 // pred_check_branch
        %744 = sbr.rel (%p742) target = $region48
      $region47: #{tpu_custom_call.1} parent=5 // pred_region
        %s745 = ssub.s32 %s22, 2
        // Predicated region
        $region49: #{tpu_custom_call.1} parent=47 // pred_check
          %p746 = pneg %p121
        $region50: #{tpu_custom_call.1} parent=47 // pred_check_branch
          %748 = sbr.rel (%p746) target = $region52
        $region51: #{tpu_custom_call.1} parent=47 // pred_region
          %s749 = sand.u32 %s106, 1
          %s750 = scalar_lea.sflag [#allocation4], %s749
          %s751 = sand.u32 %s106, 1
          %s752 = smul.addr %s751, 16
          %s753 = scalar_lea.vmem [#allocation7], %s752
          %754 = dma.done %s750, 256
        $region52: #{tpu_custom_call.1} parent=47 // pred_fallthru
          _
        // Predicated region
        $region53: #{tpu_custom_call.1} parent=47 // pred_check
          %p755 = pneg %p149
        $region54: #{tpu_custom_call.1} parent=47 // pred_check_branch
          %757 = sbr.rel (%p755) target = $region56
        $region55: #{tpu_custom_call.1} parent=47 // pred_region
          %s758 = sand.u32 %s134, 1
          %s759 = scalar_lea.sflag [#allocation9], %s758
          %s760 = sand.u32 %s134, 1
          %s761 = smul.addr %s760, 16
          %s762 = scalar_lea.vmem [#allocation8], %s761
          %763 = dma.done %s759, 256
        $region56: #{tpu_custom_call.1} parent=47 // pred_fallthru
          _
      $region48: #{tpu_custom_call.1} parent=5 // pred_fallthru
        _
    $region6: #{tpu_custom_call.1} parent=1 // loop_footer
      %s26 = sadd.s32 1, %s22
    $region7: #{tpu_custom_call.1} parent=1 // loop_footer_branch
      %21 = sbr.rel target = $region3
    $region8: #{tpu_custom_call.1} parent=1 // loop_exit
      _
    %764 = vsyncpa [#allocation3], 1
    %s765 = scalar_lea.sflag [#allocation3], 1
    %766 = vsyncpa %s765, 1
    %767 = vsyncpa [#allocation6], 1
    %s768 = scalar_lea.sflag [#allocation6], 1
    %769 = vsyncpa %s768, 1
    %770 = vsyncpa [#allocation4], 1
    %s771 = scalar_lea.sflag [#allocation4], 1
    %772 = vsyncpa %s771, 1
    %773 = vsyncpa [#allocation9], 1
    %s774 = scalar_lea.sflag [#allocation9], 1
    %775 = vsyncpa %s774, 1

</llo_original>
